<compile_context>
chip_gen: v5e
topology: v5e:2x2
jax: 0.10.0
libtpu: 0.0.40
codegen_flags: <defaults>
</compile_context>

<pallas_src>
import functools
import math

import jax
import jax.numpy as jnp
from jax import lax
from jax.experimental import pallas as pl
from jax.experimental.pallas import tpu as pltpu

LANE = 128
SUBLANE = 8


# ----------------------------------------------------------------------------
# MPE_PSN Pallas kernel
# ----------------------------------------------------------------------------
def _mpe_psn_kernel(tau, thr_ref, x_ref, u_ref, o_ref):
    """One (1, T, TILE_R, 128) block of the MPE_PSN forward.

    mem_hat_t  = (1 - Bernoulli(sigmoid(x_t))) * x_t
    mem_memo_t = tau * mem_hat_{t-1} + x_t          (mem_hat_{-1} = 0)
    o_t        = Heaviside(mem_memo_t - threshold)  (TriangularSurrogate forward)
    """
    thr = thr_ref[0]
    T = x_ref.shape[1]
    out_dt = o_ref.dtype

    # t == 0: previous mem_hat is the zero initial state -> mem_memo = x_0.
    o_ref[0, 0] = (x_ref[0, 0] > thr).astype(out_dt)

    if T > 1:
        x_prev = x_ref[0, pl.ds(0, T - 1)]          # (T-1, TILE_R, 128)
        u_prev = u_ref[0, pl.ds(0, T - 1)]
        x_cur = x_ref[0, pl.ds(1, T - 1)]
        sig = 1.0 / (1.0 + jnp.exp(-x_prev))        # sigmoid(x_{t-1}), EUP exp
        # Bernoulli(sig) sample == (u < sig); keep x where the sample is 0.
        mem_hat = jnp.where(u_prev < sig, 0.0, x_prev)
        mem_memo = tau * mem_hat + x_cur
        o_ref[0, pl.ds(1, T - 1)] = (mem_memo > thr).astype(out_dt)


def _pick_tile_rows(rows, t, target_bytes=1 << 20):
    """Largest divisor of `rows` that is a multiple of 8, keeps the per-stream
    block (t * tile_r * 128 * 4B) around `target_bytes`, and leaves >= 2 row
    tiles (pipelining / 2-TC megacore) when possible."""
    assert rows % SUBLANE == 0
    max_r = max(SUBLANE, target_bytes // (t * LANE * 4))
    if rows >= 2 * SUBLANE:
        max_r = min(max_r, rows // 2)
    best = SUBLANE
    for d in range(SUBLANE, rows + 1, SUBLANE):
        if rows % d == 0 and d <= max_r:
            best = d
    return best


def mpe_psn(x, u, threshold, *, tau, out_dtype=jnp.float32):
    """MPE_PSN forward. x, u: [B, T, ...feature dims...] float32.

    `u` is the uniform sample realizing torch.bernoulli(sigmoid(x)) (spike mask
    is u < sigmoid(x)). Returns spikes with the same shape as x.
    """
    # TODO(synk): uniforms are passed in (one extra HBM read stream) so the
    # kernel is bit-checkable against a pure-JAX reference; could switch to
    # in-kernel pltpu.prng_* to cut read traffic by a third.
    orig_shape = x.shape
    B, T = x.shape[0], x.shape[1]
    N = math.prod(x.shape[2:])

    x2 = x.reshape(B, T, N).astype(jnp.float32)
    u2 = u.reshape(B, T, N).astype(jnp.float32)
    pad = (-N) % (LANE * SUBLANE)
    if pad:
        x2 = jnp.pad(x2, ((0, 0), (0, 0), (0, pad)))
        u2 = jnp.pad(u2, ((0, 0), (0, 0), (0, pad)))
    Np = N + pad
    R = Np // LANE
    x4 = x2.reshape(B, T, R, LANE)
    u4 = u2.reshape(B, T, R, LANE)

    tile_r = _pick_tile_rows(R, T)
    blk = pl.BlockSpec((1, T, tile_r, LANE), lambda b, j: (b, 0, j, 0))
    thr_arr = jnp.full((1,), threshold, dtype=jnp.float32)

    spikes = pl.pallas_call(
        functools.partial(_mpe_psn_kernel, float(tau)),
        out_shape=jax.ShapeDtypeStruct((B, T, R, LANE), out_dtype),
        grid_spec=pltpu.PrefetchScalarGridSpec(
            num_scalar_prefetch=0,
            grid=(B, R // tile_r),
            in_specs=[pl.BlockSpec(memory_space=pltpu.SMEM), blk, blk],
            out_specs=blk,
        ),
        compiler_params=pltpu.CompilerParams(
            dimension_semantics=("parallel", "parallel"),
            vmem_limit_bytes=64 << 20,
        ),
    )(thr_arr, x4, u4)

    spikes = spikes.reshape(B, T, Np)[:, :, :N].reshape(orig_shape)
    return spikes


def mpe_psn_ref(x, u, threshold, tau):
    """Pure-JAX mirror of MPE_PSN.forward (torch.bernoulli -> u < sigmoid(x))."""
    sig = jax.nn.sigmoid(x)
    bern = (u < sig).astype(x.dtype)
    mem_hat = (1.0 - bern) * x
    v0 = jnp.zeros_like(x[:, :1])
    mem_hat = jnp.concatenate([v0, mem_hat], axis=1)
    mem_memo = mem_hat[:, :-1] * tau + x
    return (mem_memo - threshold > 0.0).astype(jnp.float32)
    # TODO(synk): MPE_PSN.mem_loss (training-time auxiliary MSE term) is not computed.


# ----------------------------------------------------------------------------
# Full VGGMPE forward (MPE_PSN layers run through the Pallas kernel)
# ----------------------------------------------------------------------------
CFG = [(2, 64), (64, 128), (128, 256), (256, 256),
       (256, 512), (512, 512), (512, 512), (512, 512)]
POOL_AFTER = (1, 3, 5, 7)          # AvgPool2d(2) after these MPE_PSN layers


def init_vggmpe_params(key):
    convs = []
    for cin, cout in CFG:
        key, kw = jax.random.split(key)
        fan_out = cout * 9
        w = math.sqrt(2.0 / fan_out) * jax.random.normal(
            kw, (cout, cin, 3, 3), jnp.float32)                 # kaiming_normal_
        b = jnp.zeros((cout,), jnp.float32)
        bn = (jnp.ones((cout,), jnp.float32), jnp.zeros((cout,), jnp.float32),
              jnp.zeros((cout,), jnp.float32), jnp.ones((cout,), jnp.float32))
        convs.append((w, b) + bn)
    key, kf = jax.random.split(key)
    w_hw = 48 // 2 // 2 // 2 // 2                               # = 3, as in the module
    fc_in = 512 * w_hw * w_hw
    bound = 1.0 / math.sqrt(fc_in)
    fc_w = jax.random.uniform(kf, (fc_in, 10), jnp.float32, -bound, bound)
    fc_b = jnp.zeros((10,), jnp.float32)
    thresholds = tuple(jnp.asarray(1.0, jnp.float32) for _ in CFG)
    return convs, (fc_w, fc_b), thresholds


@functools.partial(jax.jit, static_argnames=("tau",))
def vggmpe_forward(convs, fc, thresholds, x_seq, rng, *, tau=0.25):
    """x_seq: [B, T, 2, 48, 48] -> logits [B, T, 10]."""
    B, T = x_seq.shape[0], x_seq.shape[1]
    h = x_seq
    for i, (w, b, g, beta, mu, var) in enumerate(convs):
        # Layer = SeqToANNContainer(Conv2d(3,1,1) + BatchNorm2d) over flattened B*T.
        # TODO(synk): BatchNorm uses eval-mode running stats (train-mode batch stats
        # not implemented); conv/BN run as XLA ops, not hand-written Pallas.
        y = h.reshape((B * T,) + h.shape[2:])
        y = lax.conv_general_dilated(y, w, (1, 1), ((1, 1), (1, 1)),
                                     dimension_numbers=("NCHW", "OIHW", "NCHW"))
        y = y + b[None, :, None, None]
        inv = g / jnp.sqrt(var + 1e-5)
        y = (y - mu[None, :, None, None]) * inv[None, :, None, None] \
            + beta[None, :, None, None]
        y = y.reshape((B, T) + y.shape[1:])

        # MPE_PSN spiking neuron (Pallas kernel).
        rng, ku = jax.random.split(rng)
        u = jax.random.uniform(ku, y.shape, jnp.float32)
        h = mpe_psn(y, u, thresholds[i], tau=tau)

        if i in POOL_AFTER:                                     # SeqToANN AvgPool2d(2)
            p = h.reshape((B * T,) + h.shape[2:])
            BT, C, H, W = p.shape
            p = p.reshape(BT, C, H // 2, 2, W // 2, 2).mean(axis=(3, 5))
            h = p.reshape(B, T, C, H // 2, W // 2)

    # classifier: flatten(x, 2) -> Dropout -> Linear
    # TODO(synk): Dropout(0.25) is identity here (inference mode).
    feat = h.reshape(B, T, -1)
    fc_w, fc_b = fc
    return feat @ fc_w + fc_b


if __name__ == "__main__":
    key = jax.random.PRNGKey(0)

    # ---- 1) MPE_PSN Pallas kernel vs pure-JAX reference (small standalone shape) ----
    B, T, C, H, W = 2, 8, 4, 16, 16
    key, kx, ku = jax.random.split(key, 3)
    x = 3.0 * jax.random.uniform(kx, (B, T, C, H, W), jnp.float32) - 1.5
    u = jax.random.uniform(ku, (B, T, C, H, W), jnp.float32)
    # Keep the Bernoulli comparison away from its decision boundary so the 0/1
    # outputs of the kernel and the XLA reference compare exactly.
    u = jnp.where(jnp.abs(u - jax.nn.sigmoid(x)) < 1e-3, u + 2e-3, u)
    thr = jnp.asarray(1.0, jnp.float32)

    spikes = jax.block_until_ready(mpe_psn(x, u, thr, tau=0.25))
    ref = mpe_psn_ref(x, u, thr, 0.25)
    assert spikes.shape == x.shape
    assert bool(jnp.array_equal(spikes, ref)), "MPE_PSN kernel mismatch vs reference"

    # ---- 2) Full VGGMPE forward on CIFAR10-DVS style frames (2 x 48 x 48) ----
    T_net = 4
    key, kp, kin, kb = jax.random.split(key, 4)
    convs, fc, thresholds = init_vggmpe_params(kp)
    frames = jax.random.uniform(kin, (2, T_net, 2, 48, 48), jnp.float32)
    logits = jax.block_until_ready(vggmpe_forward(convs, fc, thresholds, frames, kb))
    assert logits.shape == (2, T_net, 10)
    assert bool(jnp.all(jnp.isfinite(logits)))

    print("KERNEL_OK")
</pallas_src>

<mosaic_0001>
module attributes {stable_mosaic.version = 11 : i64} {
  func.func @_mpe_psn_kernel(%arg0: i32, %arg1: i32, %arg2: memref<1xf32, #tpu.memory_space<smem>>, %arg3: memref<1x8x8x128xf32, #tpu.memory_space<vmem>>, %arg4: memref<1x8x8x128xf32, #tpu.memory_space<vmem>>, %arg5: memref<1x8x8x128xf32, #tpu.memory_space<vmem>>) attributes {dimension_semantics = [#tpu.dimension_semantics<parallel>, #tpu.dimension_semantics<parallel>], iteration_bounds = array<i64: 2, 1>, scalar_prefetch = 0 : i64, scratch_operands = 0 : i64, tpu.core_type = #tpu.core_type<tc>, window_params = [{transform_indices = @transform_0, window_bounds = array<i64: 1>}, {transform_indices = @transform_1, window_bounds = array<i64: 1, 8, 8, 128>}, {transform_indices = @transform_2, window_bounds = array<i64: 1, 8, 8, 128>}, {transform_indices = @transform_3, window_bounds = array<i64: 1, 8, 8, 128>}]} {
    %c0 = arith.constant 0 : index
    %0 = memref.load %arg2[%c0] : memref<1xf32, #tpu.memory_space<smem>>
    %c0_0 = arith.constant 0 : index
    %c0_1 = arith.constant 0 : index
    %c0_2 = arith.constant 0 : index
    %c0_3 = arith.constant 0 : index
    %1 = vector.load %arg3[%c0_0, %c0_1, %c0_2, %c0_3] : memref<1x8x8x128xf32, #tpu.memory_space<vmem>>, vector<1x1x8x128xf32>
    %2 = vector.shape_cast %1 : vector<1x1x8x128xf32> to vector<8x128xf32>
    %3 = vector.broadcast %0 : f32 to vector<8x128xf32>
    %4 = arith.cmpf ogt, %2, %3 : vector<8x128xf32>
    %5 = arith.extui %4 : vector<8x128xi1> to vector<8x128xi32>
    %6 = arith.sitofp %5 : vector<8x128xi32> to vector<8x128xf32>
    %c0_4 = arith.constant 0 : index
    %c0_5 = arith.constant 0 : index
    %c0_6 = arith.constant 0 : index
    %c0_7 = arith.constant 0 : index
    %7 = vector.load %arg5[%c0_4, %c0_5, %c0_6, %c0_7] : memref<1x8x8x128xf32, #tpu.memory_space<vmem>>, vector<1x1x8x128xf32>
    %8 = vector.shape_cast %7 : vector<1x1x8x128xf32> to vector<8x128xf32>
    %9 = vector.shape_cast %6 : vector<8x128xf32> to vector<1x1x8x128xf32>
    tpu.vector_store %arg5[%c0_4, %c0_5, %c0_6, %c0_7], %9 {strides = array<i32>} : memref<1x8x8x128xf32, #tpu.memory_space<vmem>>, vector<1x1x8x128xf32>,
    %c0_8 = arith.constant 0 : index
    %c0_9 = arith.constant 0 : index
    %c0_10 = arith.constant 0 : index
    %c0_11 = arith.constant 0 : index
    %10 = vector.load %arg3[%c0_8, %c0_9, %c0_10, %c0_11] : memref<1x8x8x128xf32, #tpu.memory_space<vmem>>, vector<1x7x8x128xf32>
    %11 = vector.shape_cast %10 : vector<1x7x8x128xf32> to vector<7x8x128xf32>
    %c0_12 = arith.constant 0 : index
    %c0_13 = arith.constant 0 : index
    %c0_14 = arith.constant 0 : index
    %c0_15 = arith.constant 0 : index
    %12 = vector.load %arg4[%c0_12, %c0_13, %c0_14, %c0_15] : memref<1x8x8x128xf32, #tpu.memory_space<vmem>>, vector<1x7x8x128xf32>
    %13 = vector.shape_cast %12 : vector<1x7x8x128xf32> to vector<7x8x128xf32>
    %c0_16 = arith.constant 0 : index
    %c1 = arith.constant 1 : index
    %c0_17 = arith.constant 0 : index
    %c0_18 = arith.constant 0 : index
    %14 = vector.load %arg3[%c0_16, %c1, %c0_17, %c0_18] : memref<1x8x8x128xf32, #tpu.memory_space<vmem>>, vector<1x7x8x128xf32>
    %15 = vector.shape_cast %14 : vector<1x7x8x128xf32> to vector<7x8x128xf32>
    %cst = arith.constant 0.000000e+00 : f32
    %16 = vector.broadcast %cst : f32 to vector<7x8x128xf32>
    %17 = arith.subf %16, %11 : vector<7x8x128xf32>
    %18 = math.exp %17 : vector<7x8x128xf32>
    %cst_19 = arith.constant 1.000000e+00 : f32
    %19 = vector.broadcast %cst_19 : f32 to vector<7x8x128xf32>
    %20 = arith.addf %19, %18 : vector<7x8x128xf32>
    %cst_20 = arith.constant 1.000000e+00 : f32
    %21 = vector.broadcast %cst_20 : f32 to vector<7x8x128xf32>
    %22 = arith.divf %21, %20 : vector<7x8x128xf32>
    %23 = arith.cmpf olt, %13, %22 : vector<7x8x128xf32>
    %cst_21 = arith.constant 0.000000e+00 : f32
    %24 = vector.broadcast %cst_21 : f32 to vector<7x8x128xf32>
    %25 = arith.select %23, %24, %11 : vector<7x8x128xi1>, vector<7x8x128xf32>
    %cst_22 = arith.constant 2.500000e-01 : f32
    %26 = vector.broadcast %cst_22 : f32 to vector<7x8x128xf32>
    %27 = arith.mulf %26, %25 : vector<7x8x128xf32>
    %28 = arith.addf %27, %15 : vector<7x8x128xf32>
    %29 = vector.broadcast %0 : f32 to vector<7x8x128xf32>
    %30 = arith.cmpf ogt, %28, %29 : vector<7x8x128xf32>
    %31 = arith.extui %30 : vector<7x8x128xi1> to vector<7x8x128xi32>
    %32 = arith.sitofp %31 : vector<7x8x128xi32> to vector<7x8x128xf32>
    %c0_23 = arith.constant 0 : index
    %c1_24 = arith.constant 1 : index
    %c0_25 = arith.constant 0 : index
    %c0_26 = arith.constant 0 : index
    %33 = vector.load %arg5[%c0_23, %c1_24, %c0_25, %c0_26] : memref<1x8x8x128xf32, #tpu.memory_space<vmem>>, vector<1x7x8x128xf32>
    %34 = vector.shape_cast %33 : vector<1x7x8x128xf32> to vector<7x8x128xf32>
    %35 = vector.shape_cast %32 : vector<7x8x128xf32> to vector<1x7x8x128xf32>
    tpu.vector_store %arg5[%c0_23, %c1_24, %c0_25, %c0_26], %35 {strides = array<i32>} : memref<1x8x8x128xf32, #tpu.memory_space<vmem>>, vector<1x7x8x128xf32>,
    return
  }
  func.func @transform_0(%arg0: i32, %arg1: i32) -> i32 {
    %c0_i32 = arith.constant 0 : i32
    %c0_i32_0 = arith.constant 0 : i32
    return %c0_i32 : i32
  }
  func.func @transform_1(%arg0: i32, %arg1: i32) -> (i32, i32, i32, i32) {
    %c0_i32 = arith.constant 0 : i32
    %c0_i32_0 = arith.constant 0 : i32
    %c0_i32_1 = arith.constant 0 : i32
    return %arg0, %c0_i32, %arg1, %c0_i32_0 : i32, i32, i32, i32
  }
  func.func @transform_2(%arg0: i32, %arg1: i32) -> (i32, i32, i32, i32) {
    %c0_i32 = arith.constant 0 : i32
    %c0_i32_0 = arith.constant 0 : i32
    %c0_i32_1 = arith.constant 0 : i32
    return %arg0, %c0_i32, %arg1, %c0_i32_0 : i32, i32, i32, i32
  }
  func.func @transform_3(%arg0: i32, %arg1: i32) -> (i32, i32, i32, i32) {
    %c0_i32 = arith.constant 0 : i32
    %c0_i32_0 = arith.constant 0 : i32
    %c0_i32_1 = arith.constant 0 : i32
    return %arg0, %c0_i32, %arg1, %c0_i32_0 : i32, i32, i32, i32
  }
}

</mosaic_0001>

<llo_original>
// kernel: tpu_custom_call.1
$region0: #{tpu_custom_call.1}
  #allocation0 [shape = 'u32[]', space=smem, size = 0x4, offset = 0x4, fixed_abs, tag = 'smem constant byte address 0x4 - core index']
  #allocation1 [shape = 'u32[72,128]{1,0:T(1,128)}', space=vmem, size = 0x9000, scoped, tag = 'internal scratch']
  #allocation2 [shape = 'f32[1]{0:T(128)S(6)}', space=smem, size = 0x200, scoped, tag = 'scoped memory for tpu_custom_call.1']
  %s0 = inlined_call_operand.<no memory space> [shape: f32[1], index: 0, kind: input, shape index: {}]
  %s1 = inlined_call_operand.hbm [shape: f32[2,8,8,128], index: 1, kind: input, shape index: {}]
  %s2 = inlined_call_operand.hbm [shape: f32[2,8,8,128], index: 2, kind: input, shape index: {}]
  %s3 = inlined_call_operand.hbm [shape: f32[2,8,8,128], index: 3, kind: output, shape index: {}]
  %s4 = sld [smem:[#allocation0]]
  $region53: #{tpu_custom_call.1} parent=0
    _
  %s6 = ssub.s32 1, %s4
  %s7 = scalar_select 0, %s6, %s4
  %8 = sst [smem:[#allocation2]] %s0
  $region1: #{tpu_custom_call.1} parent=0
    #allocation3 [shape = 'u8[65536]{0}', space=vmem, size = 0x10000, scoped, tag = 'input window, operand 1']
    #allocation4 [shape = 's32[2]{0}', space=sflag, size = 0x8, scoped, tag = 'scoped memory for tpu_custom_call.1']
    #allocation5 [shape = 's32[2]{0}', space=sflag, size = 0x8, scoped, tag = 'scoped memory for tpu_custom_call.1']
    #allocation6 [shape = 'u8[65536]{0}', space=vmem, size = 0x10000, scoped, tag = 'input window, operand 2']
    #allocation7 [shape = 's32[2]{0}', space=sflag, size = 0x8, scoped, tag = 'scoped memory for tpu_custom_call.1']
    #allocation8 [shape = 'u8[65536]{0}', space=vmem, size = 0x10000, scoped, tag = 'output window, operand 0']
    %9 = vsyncpa [#allocation4], 0
    %s10 = scalar_lea.sflag [#allocation4], 1
    %11 = vsyncpa %s10, 0
    %12 = vsyncpa [#allocation7], 0
    %s13 = scalar_lea.sflag [#allocation7], 1
    %14 = vsyncpa %s13, 0
    %15 = vsyncpa [#allocation5], 0
    %s16 = scalar_lea.sflag [#allocation5], 1
    %17 = vsyncpa %s16, 0
    loop: start=0, step=1, limit=4
    $region2: #{tpu_custom_call.1} parent=1 // loop_pre_header
      _
    $region3: #{tpu_custom_call.1} parent=1 // loop_header
      %s19 = sphi 0, %s23
      %p20 = scmp.ge.s32.totalorder %s19, 4
      %s26 = sphi 0, %s38
      %s27 = sphi 0, %s34
      %s28 = sphi 0, %s26
      %s29 = sphi 0, %s27
      %s30 = sphi 0, %s28
      %s31 = sphi 0, %s29
      %s39 = sphi 0, %s39
      %s41 = sphi 0, %s39
      %s42 = sphi 0, %s41
      %s56 = sphi 0, %s42
      %s64 = sphi 0, %s66
      %s67 = sphi 0, %s64
      %s68 = sphi 0, %s67
      %s84 = sphi 0, %s68
      %s92 = sphi 0, %s94
      %s95 = sphi 0, %s92
      %s96 = sphi 0, %s95
      %s112 = sphi 0, %s96
      %s120 = sphi 0, %s122
      %s123 = sphi 0, %s120
      %s124 = sphi 0, %s123
      %s140 = sphi 0, %s124
    $region4: #{tpu_custom_call.1} parent=1 // loop_header_branch
      %22 = sbr.rel (%p20) target = $region8
    $region5: #{tpu_custom_call.1} parent=1 // loop_body
      %s24 = ssub.s32 %s19, 1
      %s25 = ssub.s32 %s19, 2
      %s32 = sadd.s32 1, %s27
      %p33 = scmp.ge.s32.totalorder %s32, 1
      %s34 = scalar_select %p33, 0, %s32
      %s35 = sadd.s32 1, %s26
      %s36 = scalar_select %p33, %s35, %s26
      %p37 = scmp.ge.s32.totalorder %s36, 2
      %s38 = scalar_select %p37, 0, %s36
      %s40 = sadd.s32 %s39, 1
      %p43 = scmp.eq.s32.totalorder %s19, 1
      %p44 = scmp.ne.s32.totalorder %s39, %s41
      %p45 = scmp.eq.s32.totalorder %s19, 0
      %p46 = por %p44, %p45
      %p47 = scmp.ne.s32.totalorder %s39, %s41
      %p48 = scmp.eq.s32.totalorder %s24, 1
      %p49 = por %p47, %p48
      %p50 = scmp.ne.s32.totalorder %s41, %s42
      %p51 = scmp.eq.s32.totalorder %s24, 0
      %p52 = por %p50, %p51
      %p53 = scmp.ne.s32.totalorder %s41, %s42
      %p54 = scmp.eq.s32.totalorder %s25, 1
      %p55 = por %p53, %p54
      %p57 = scmp.ne.s32.totalorder %s42, %s56
      %p58 = scmp.eq.s32.totalorder %s25, 0
      %p59 = por %p57, %p58
      %s60 = ssub.s32 %s26, %s38
      %s61 = ssub.s32 %s27, %s34
      %s62 = sor.u32 %s60, %s61
      %p63 = scmp.eq.s32.totalorder %s62, 0
      %s65 = sadd.s32 %s64, 1
      %s66 = scalar_select %p63, %s64, %s65
      %p69 = pneg %p63
      %p70 = scmp.eq.s32.totalorder %s19, 1
      %p71 = por %p69, %p70
      %p72 = scmp.ne.s32.totalorder %s64, %s67
      %p73 = scmp.eq.s32.totalorder %s19, 0
      %p74 = por %p72, %p73
      %p75 = scmp.ne.s32.totalorder %s64, %s67
      %p76 = scmp.eq.s32.totalorder %s24, 1
      %p77 = por %p75, %p76
      %p78 = scmp.ne.s32.totalorder %s67, %s68
      %p79 = scmp.eq.s32.totalorder %s24, 0
      %p80 = por %p78, %p79
      %p81 = scmp.ne.s32.totalorder %s67, %s68
      %p82 = scmp.eq.s32.totalorder %s25, 1
      %p83 = por %p81, %p82
      %p85 = scmp.ne.s32.totalorder %s68, %s84
      %p86 = scmp.eq.s32.totalorder %s25, 0
      %p87 = por %p85, %p86
      %s88 = ssub.s32 %s26, %s38
      %s89 = ssub.s32 %s27, %s34
      %s90 = sor.u32 %s88, %s89
      %p91 = scmp.eq.s32.totalorder %s90, 0
      %s93 = sadd.s32 %s92, 1
      %s94 = scalar_select %p91, %s92, %s93
      %p97 = pneg %p91
      %p98 = scmp.eq.s32.totalorder %s19, 1
      %p99 = por %p97, %p98
      %p100 = scmp.ne.s32.totalorder %s92, %s95
      %p101 = scmp.eq.s32.totalorder %s19, 0
      %p102 = por %p100, %p101
      %p103 = scmp.ne.s32.totalorder %s92, %s95
      %p104 = scmp.eq.s32.totalorder %s24, 1
      %p105 = por %p103, %p104
      %p106 = scmp.ne.s32.totalorder %s95, %s96
      %p107 = scmp.eq.s32.totalorder %s24, 0
      %p108 = por %p106, %p107
      %p109 = scmp.ne.s32.totalorder %s95, %s96
      %p110 = scmp.eq.s32.totalorder %s25, 1
      %p111 = por %p109, %p110
      %p113 = scmp.ne.s32.totalorder %s96, %s112
      %p114 = scmp.eq.s32.totalorder %s25, 0
      %p115 = por %p113, %p114
      %s116 = ssub.s32 %s26, %s38
      %s117 = ssub.s32 %s27, %s34
      %s118 = sor.u32 %s116, %s117
      %p119 = scmp.eq.s32.totalorder %s118, 0
      %s121 = sadd.s32 %s120, 1
      %s122 = scalar_select %p119, %s120, %s121
      %p125 = pneg %p119
      %p126 = scmp.eq.s32.totalorder %s19, 1
      %p127 = por %p125, %p126
      %p128 = scmp.ne.s32.totalorder %s120, %s123
      %p129 = scmp.eq.s32.totalorder %s19, 0
      %p130 = por %p128, %p129
      %p131 = scmp.ne.s32.totalorder %s120, %s123
      %p132 = scmp.eq.s32.totalorder %s24, 1
      %p133 = por %p131, %p132
      %p134 = scmp.ne.s32.totalorder %s123, %s124
      %p135 = scmp.eq.s32.totalorder %s24, 0
      %p136 = por %p134, %p135
      %p137 = scmp.ne.s32.totalorder %s123, %s124
      %p138 = scmp.eq.s32.totalorder %s25, 1
      %p139 = por %p137, %p138
      %p141 = scmp.ne.s32.totalorder %s124, %s140
      %p142 = scmp.eq.s32.totalorder %s25, 0
      %p143 = por %p141, %p142
      %p144 = scmp.le.s32.totalorder 1, %s19
      %p145 = scmp.lt.s32.totalorder %s19, 3
      %p146 = pnand %p144, %p145
      %p147 = pneg %p146
      // Predicated region
      $region9: #{tpu_custom_call.1} parent=5 // pred_check
        _
      $region10: #{tpu_custom_call.1} parent=5 // pred_check_branch
        %149 = sbr.rel (%p146) target = $region12
      $region11: #{tpu_custom_call.1} parent=5 // pred_region
        %s150 = ssub.s32 %s19, 1
        // Predicated region
        $region13: #{tpu_custom_call.1} parent=11 // pred_check
          %p151 = pneg %p52
        $region14: #{tpu_custom_call.1} parent=11 // pred_check_branch
          %153 = sbr.rel (%p151) target = $region16
        $region15: #{tpu_custom_call.1} parent=11 // pred_region
          _
        $region16: #{tpu_custom_call.1} parent=11 // pred_fallthru
          _
      $region12: #{tpu_custom_call.1} parent=5 // pred_fallthru
        _
      %p154 = scmp.lt.s32.totalorder %s19, 2
      // Predicated region
      $region17: #{tpu_custom_call.1} parent=5 // pred_check
        %p155 = pneg %p154
      $region18: #{tpu_custom_call.1} parent=5 // pred_check_branch
        %157 = sbr.rel (%p155) target = $region20
      $region19: #{tpu_custom_call.1} parent=5 // pred_region
        // Predicated region
        $region21: #{tpu_custom_call.1} parent=19 // pred_check
          %p158 = pneg %p74
        $region22: #{tpu_custom_call.1} parent=19 // pred_check_branch
          %160 = sbr.rel (%p158) target = $region24
        $region23: #{tpu_custom_call.1} parent=19 // pred_region
          %s161 = sand.u32 %s64, 1
          %s162 = scalar_lea.sflag [#allocation4], %s161
          %s163 = sand.u32 %s64, 1
          %s164 = smul.addr %s163, 64
          %s165 = scalar_lea.vmem [#allocation3], %s164
          %167 = vsyncadd %s162, 0
          %s168 = smul.addr %s26, 8
          %s169 = sadd.s32 %s27, %s168
          %s170 = smul.addr %s169, 8
          %s171 = scalar_lea.hbm %s1, %s170
          %s172 = sshll.u32 %s171, 4
          %s173 = int_to_ptr.hbm [resolvable:$true] %s172
          %s174 = sshll.u32 %s165, 4
          %s175 = int_to_ptr.vmem [resolvable:$true] %s174
          %180 = dma.hbm_to_vmem [thread:$0]  %s173, 1024, %s175, %s162, 128, 128, 8
        $region24: #{tpu_custom_call.1} parent=19 // pred_fallthru
          _
        // Predicated region
        $region25: #{tpu_custom_call.1} parent=19 // pred_check
          %p181 = pneg %p102
        $region26: #{tpu_custom_call.1} parent=19 // pred_check_branch
          %183 = sbr.rel (%p181) target = $region28
        $region27: #{tpu_custom_call.1} parent=19 // pred_region
          %s184 = sand.u32 %s92, 1
          %s185 = scalar_lea.sflag [#allocation7], %s184
          %s186 = sand.u32 %s92, 1
          %s187 = smul.addr %s186, 64
          %s188 = scalar_lea.vmem [#allocation6], %s187
          %190 = vsyncadd %s185, 0
          %s191 = smul.addr %s26, 8
          %s192 = sadd.s32 %s27, %s191
          %s193 = smul.addr %s192, 8
          %s194 = scalar_lea.hbm %s2, %s193
          %s195 = sshll.u32 %s194, 4
          %s196 = int_to_ptr.hbm [resolvable:$true] %s195
          %s197 = sshll.u32 %s188, 4
          %s198 = int_to_ptr.vmem [resolvable:$true] %s197
          %203 = dma.hbm_to_vmem [thread:$0]  %s196, 1024, %s198, %s185, 128, 128, 8
        $region28: #{tpu_custom_call.1} parent=19 // pred_fallthru
          _
      $region20: #{tpu_custom_call.1} parent=5 // pred_fallthru
        _
      %p204 = scmp.le.s32.totalorder 1, %s19
      %p205 = scmp.lt.s32.totalorder %s19, 3
      %p206 = pnand %p204, %p205
      %p207 = pneg %p206
      // Predicated region
      $region29: #{tpu_custom_call.1} parent=5 // pred_check
        _
      $region30: #{tpu_custom_call.1} parent=5 // pred_check_branch
        %209 = sbr.rel (%p206) target = $region32
      $region31: #{tpu_custom_call.1} parent=5 // pred_region
        %s210 = ssub.s32 %s19, 1
        %s211 = sand.u32 %s67, 1
        %s212 = scalar_lea.sflag [#allocation4], %s211
        %s213 = sand.u32 %s67, 1
        %s214 = smul.addr %s213, 64
        %s215 = scalar_lea.vmem [#allocation3], %s214
        // Predicated region
        $region33: #{tpu_custom_call.1} parent=31 // pred_check
          %p216 = pneg %p80
        $region34: #{tpu_custom_call.1} parent=31 // pred_check_branch
          %218 = sbr.rel (%p216) target = $region36
        $region35: #{tpu_custom_call.1} parent=31 // pred_region
          %220 = dma.done %s212, 1024
        $region36: #{tpu_custom_call.1} parent=31 // pred_fallthru
          _
        %s221 = sand.u32 %s95, 1
        %s222 = scalar_lea.sflag [#allocation7], %s221
        %s223 = sand.u32 %s95, 1
        %s224 = smul.addr %s223, 64
        %s225 = scalar_lea.vmem [#allocation6], %s224
        // Predicated region
        $region37: #{tpu_custom_call.1} parent=31 // pred_check
          %p226 = pneg %p108
        $region38: #{tpu_custom_call.1} parent=31 // pred_check_branch
          %228 = sbr.rel (%p226) target = $region40
        $region39: #{tpu_custom_call.1} parent=31 // pred_region
          %230 = dma.done %s222, 1024
        $region40: #{tpu_custom_call.1} parent=31 // pred_fallthru
          _
        %p231 = pneg %p52
        %p232 = pneg %p49
        %s233 = sand.u32 %s67, 1
        %s234 = scalar_lea.sflag [#allocation4], %s233
        %s235 = sand.u32 %s67, 1
        %s236 = smul.addr %s235, 64
        %s237 = scalar_lea.vmem [#allocation3], %s236
        %p238 = pneg %p80
        %p239 = pneg %p77
        %s240 = sand.u32 %s95, 1
        %s241 = scalar_lea.sflag [#allocation7], %s240
        %s242 = sand.u32 %s95, 1
        %s243 = smul.addr %s242, 64
        %s244 = scalar_lea.vmem [#allocation6], %s243
        %p245 = pneg %p108
        %p246 = pneg %p105
        %p247 = pneg %p136
        %p248 = pneg %p133
        %s249 = sand.u32 %s123, 1
        %s250 = scalar_lea.sflag [#allocation5], %s249
        %s251 = sand.u32 %s123, 1
        %s252 = smul.addr %s251, 64
        %s253 = scalar_lea.vmem [#allocation8], %s252
        %s254 = sld [smem:[#allocation2]]
        %v255 = vld [vmem:[%s215] sm:$0xff]
        %v256 = vstv %s254
        %vm257 = vcmp.gt.f32.partialorder %v255, %v256
        %v258 = vsel %vm257, 1, 0
        %v259 = vcvt.s32.f32 %v258
        %260 = vst [vmem:[%s253] sm:$0xff] %v259
        %v261 = vld [vmem:[%s215] sm:$0xff]
        %v262 = vld [vmem:[%s215 + $0x8] sm:$0xff]
        %v263 = vld [vmem:[%s215 + $0x10] sm:$0xff]
        %v264 = vld [vmem:[%s215 + $0x18] sm:$0xff]
        %v265 = vld [vmem:[%s215 + $0x20] sm:$0xff]
        %v266 = vld [vmem:[%s215 + $0x28] sm:$0xff]
        %v267 = vld [vmem:[%s215 + $0x30] sm:$0xff]
        %v268 = vld [vmem:[%s225] sm:$0xff]
        %v269 = vld [vmem:[%s225 + $0x8] sm:$0xff]
        %v270 = vld [vmem:[%s225 + $0x10] sm:$0xff]
        %v271 = vld [vmem:[%s225 + $0x18] sm:$0xff]
        %v272 = vld [vmem:[%s225 + $0x20] sm:$0xff]
        %v273 = vld [vmem:[%s225 + $0x28] sm:$0xff]
        %v274 = vld [vmem:[%s225 + $0x30] sm:$0xff]
        %s275 = scalar_lea.vmem %s215, 8 [#allocation3]
        %v276 = vld [vmem:[%s275] sm:$0xff]
        %v277 = vld [vmem:[%s275 + $0x8] sm:$0xff]
        %v278 = vld [vmem:[%s275 + $0x10] sm:$0xff]
        %v279 = vld [vmem:[%s275 + $0x18] sm:$0xff]
        %v280 = vld [vmem:[%s275 + $0x20] sm:$0xff]
        %v281 = vld [vmem:[%s275 + $0x28] sm:$0xff]
        %v282 = vld [vmem:[%s275 + $0x30] sm:$0xff]
        %v283 = vsub.f32 0.0, %v261
        %v284 = vsub.f32 0.0, %v262
        %v285 = vsub.f32 0.0, %v263
        %v286 = vsub.f32 0.0, %v264
        %v287 = vsub.f32 0.0, %v265
        %v288 = vsub.f32 0.0, %v266
        %v289 = vsub.f32 0.0, %v267
        %v290 = vmul.f32 %v283, 1.442695
        %v291 = vpow.pop %v290
        %v292 = vmul.f32 %v284, 1.442695
        %v293 = vpow.pop %v292
        %v294 = vmul.f32 %v285, 1.442695
        %v295 = vpow.pop %v294
        %v296 = vmul.f32 %v286, 1.442695
        %v297 = vpow.pop %v296
        %v298 = vmul.f32 %v287, 1.442695
        %v299 = vpow.pop %v298
        %v300 = vmul.f32 %v288, 1.442695
        %v301 = vpow.pop %v300
        %v302 = vmul.f32 %v289, 1.442695
        %v303 = vpow.pop %v302
        %v304 = vadd.f32 %v291, 1.0
        %v305 = vadd.f32 %v293, 1.0
        %v306 = vadd.f32 %v295, 1.0
        %v307 = vadd.f32 %v297, 1.0
        %v308 = vadd.f32 %v299, 1.0
        %v309 = vadd.f32 %v301, 1.0
        %v310 = vadd.f32 %v303, 1.0
        %v311 = vrcp.pop %v304
        %v312 = vmul.f32 %v304, %v311
        %v313 = vsub.f32 1.0, %v312
        %v314 = vmul.f32 %v311, %v313
        %v315 = vadd.f32 %v311, %v314
        %vm316 = vweird.f32 %v304
        %vm317 = vweird.f32 %v311
        %vm318 = vmor %vm316, %vm317
        %v319 = vsel %vm318, %v311, %v315
        %v320 = vand.u32 2147483647, %v304
        %vm321 = vcmp.eq.f32.partialorder %v320, 8.507059e+37
        %v322 = vand.u32 %v304, 2147483648
        %v323 = vor.u32 1.1754944e-38, %v322
        %v324 = vsel %vm321, %v323, %v319
        %v325 = vmul.f32 1.0, %v324
        %v326 = vrcp.pop %v305
        %v327 = vmul.f32 %v305, %v326
        %v328 = vsub.f32 1.0, %v327
        %v329 = vmul.f32 %v326, %v328
        %v330 = vadd.f32 %v326, %v329
        %vm331 = vweird.f32 %v305
        %vm332 = vweird.f32 %v326
        %vm333 = vmor %vm331, %vm332
        %v334 = vsel %vm333, %v326, %v330
        %v335 = vand.u32 2147483647, %v305
        %vm336 = vcmp.eq.f32.partialorder %v335, 8.507059e+37
        %v337 = vand.u32 %v305, 2147483648
        %v338 = vor.u32 1.1754944e-38, %v337
        %v339 = vsel %vm336, %v338, %v334
        %v340 = vmul.f32 1.0, %v339
        %v341 = vrcp.pop %v306
        %v342 = vmul.f32 %v306, %v341
        %v343 = vsub.f32 1.0, %v342
        %v344 = vmul.f32 %v341, %v343
        %v345 = vadd.f32 %v341, %v344
        %vm346 = vweird.f32 %v306
        %vm347 = vweird.f32 %v341
        %vm348 = vmor %vm346, %vm347
        %v349 = vsel %vm348, %v341, %v345
        %v350 = vand.u32 2147483647, %v306
        %vm351 = vcmp.eq.f32.partialorder %v350, 8.507059e+37
        %v352 = vand.u32 %v306, 2147483648
        %v353 = vor.u32 1.1754944e-38, %v352
        %v354 = vsel %vm351, %v353, %v349
        %v355 = vmul.f32 1.0, %v354
        %v356 = vrcp.pop %v307
        %v357 = vmul.f32 %v307, %v356
        %v358 = vsub.f32 1.0, %v357
        %v359 = vmul.f32 %v356, %v358
        %v360 = vadd.f32 %v356, %v359
        %vm361 = vweird.f32 %v307
        %vm362 = vweird.f32 %v356
        %vm363 = vmor %vm361, %vm362
        %v364 = vsel %vm363, %v356, %v360
        %v365 = vand.u32 2147483647, %v307
        %vm366 = vcmp.eq.f32.partialorder %v365, 8.507059e+37
        %v367 = vand.u32 %v307, 2147483648
        %v368 = vor.u32 1.1754944e-38, %v367
        %v369 = vsel %vm366, %v368, %v364
        %v370 = vmul.f32 1.0, %v369
        %v371 = vrcp.pop %v308
        %v372 = vmul.f32 %v308, %v371
        %v373 = vsub.f32 1.0, %v372
        %v374 = vmul.f32 %v371, %v373
        %v375 = vadd.f32 %v371, %v374
        %vm376 = vweird.f32 %v308
        %vm377 = vweird.f32 %v371
        %vm378 = vmor %vm376, %vm377
        %v379 = vsel %vm378, %v371, %v375
        %v380 = vand.u32 2147483647, %v308
        %vm381 = vcmp.eq.f32.partialorder %v380, 8.507059e+37
        %v382 = vand.u32 %v308, 2147483648
        %v383 = vor.u32 1.1754944e-38, %v382
        %v384 = vsel %vm381, %v383, %v379
        %v385 = vmul.f32 1.0, %v384
        %v386 = vrcp.pop %v309
        %v387 = vmul.f32 %v309, %v386
        %v388 = vsub.f32 1.0, %v387
        %v389 = vmul.f32 %v386, %v388
        %v390 = vadd.f32 %v386, %v389
        %vm391 = vweird.f32 %v309
        %vm392 = vweird.f32 %v386
        %vm393 = vmor %vm391, %vm392
        %v394 = vsel %vm393, %v386, %v390
        %v395 = vand.u32 2147483647, %v309
        %vm396 = vcmp.eq.f32.partialorder %v395, 8.507059e+37
        %v397 = vand.u32 %v309, 2147483648
        %v398 = vor.u32 1.1754944e-38, %v397
        %v399 = vsel %vm396, %v398, %v394
        %v400 = vmul.f32 1.0, %v399
        %v401 = vrcp.pop %v310
        %v402 = vmul.f32 %v310, %v401
        %v403 = vsub.f32 1.0, %v402
        %v404 = vmul.f32 %v401, %v403
        %v405 = vadd.f32 %v401, %v404
        %vm406 = vweird.f32 %v310
        %vm407 = vweird.f32 %v401
        %vm408 = vmor %vm406, %vm407
        %v409 = vsel %vm408, %v401, %v405
        %v410 = vand.u32 2147483647, %v310
        %vm411 = vcmp.eq.f32.partialorder %v410, 8.507059e+37
        %v412 = vand.u32 %v310, 2147483648
        %v413 = vor.u32 1.1754944e-38, %v412
        %v414 = vsel %vm411, %v413, %v409
        %v415 = vmul.f32 1.0, %v414
        %vm416 = vcmp.lt.f32.partialorder %v268, %v325
        %vm417 = vcmp.lt.f32.partialorder %v269, %v340
        %vm418 = vcmp.lt.f32.partialorder %v270, %v355
        %vm419 = vcmp.lt.f32.partialorder %v271, %v370
        %vm420 = vcmp.lt.f32.partialorder %v272, %v385
        %vm421 = vcmp.lt.f32.partialorder %v273, %v400
        %vm422 = vcmp.lt.f32.partialorder %v274, %v415
        %v423 = vsel %vm416, 0.0, %v261
        %v424 = vsel %vm417, 0.0, %v262
        %v425 = vsel %vm418, 0.0, %v263
        %v426 = vsel %vm419, 0.0, %v264
        %v427 = vsel %vm420, 0.0, %v265
        %v428 = vsel %vm421, 0.0, %v266
        %v429 = vsel %vm422, 0.0, %v267
        %v430 = vmul.f32 %v423, 0.25
        %v431 = vmul.f32 %v424, 0.25
        %v432 = vmul.f32 %v425, 0.25
        %v433 = vmul.f32 %v426, 0.25
        %v434 = vmul.f32 %v427, 0.25
        %v435 = vmul.f32 %v428, 0.25
        %v436 = vmul.f32 %v429, 0.25
        %v437 = vadd.f32 %v430, %v276
        %v438 = vadd.f32 %v431, %v277
        %v439 = vadd.f32 %v432, %v278
        %v440 = vadd.f32 %v433, %v279
        %v441 = vadd.f32 %v434, %v280
        %v442 = vadd.f32 %v435, %v281
        %v443 = vadd.f32 %v436, %v282
        %vm444 = vcmp.gt.f32.partialorder %v437, %v256
        %vm445 = vcmp.gt.f32.partialorder %v438, %v256
        %vm446 = vcmp.gt.f32.partialorder %v439, %v256
        %vm447 = vcmp.gt.f32.partialorder %v440, %v256
        %vm448 = vcmp.gt.f32.partialorder %v441, %v256
        %vm449 = vcmp.gt.f32.partialorder %v442, %v256
        %vm450 = vcmp.gt.f32.partialorder %v443, %v256
        %v451 = vsel %vm444, 1, 0
        %v452 = vsel %vm445, 1, 0
        %v453 = vsel %vm446, 1, 0
        %v454 = vsel %vm447, 1, 0
        %v455 = vsel %vm448, 1, 0
        %v456 = vsel %vm449, 1, 0
        %v457 = vsel %vm450, 1, 0
        %v458 = vcvt.s32.f32 %v451
        %v459 = vcvt.s32.f32 %v452
        %v460 = vcvt.s32.f32 %v453
        %v461 = vcvt.s32.f32 %v454
        %v462 = vcvt.s32.f32 %v455
        %v463 = vcvt.s32.f32 %v456
        %v464 = vcvt.s32.f32 %v457
        %s465 = scalar_lea.vmem %s253, 8 [#allocation8]
        %466 = vst [vmem:[%s465] sm:$0xff] %v458
        %467 = vst [vmem:[%s465 + $0x8] sm:$0xff] %v459
        %468 = vst [vmem:[%s465 + $0x10] sm:$0xff] %v460
        %469 = vst [vmem:[%s465 + $0x18] sm:$0xff] %v461
        %470 = vst [vmem:[%s465 + $0x20] sm:$0xff] %v462
        %471 = vst [vmem:[%s465 + $0x28] sm:$0xff] %v463
        %472 = vst [vmem:[%s465 + $0x30] sm:$0xff] %v464
        %s473 = sand.u32 %s123, 1
        %s474 = scalar_lea.sflag [#allocation5], %s473
        %s475 = sand.u32 %s123, 1
        %s476 = smul.addr %s475, 64
        %s477 = scalar_lea.vmem [#allocation8], %s476
        // Predicated region
        $region41: #{tpu_custom_call.1} parent=31 // pred_check
          %p478 = pneg %p133
        $region42: #{tpu_custom_call.1} parent=31 // pred_check_branch
          %480 = sbr.rel (%p478) target = $region44
        $region43: #{tpu_custom_call.1} parent=31 // pred_region
          %482 = vsyncadd %s474, 0
          %s483 = smul.addr %s28, 8
          %s484 = sadd.s32 %s29, %s483
          %s485 = smul.addr %s484, 8
          %s486 = scalar_lea.hbm %s3, %s485
          %s487 = sshll.u32 %s477, 4
          %s488 = int_to_ptr.vmem [resolvable:$true] %s487
          %s489 = sshll.u32 %s486, 4
          %s490 = int_to_ptr.hbm [resolvable:$true] %s489
          %495 = dma.vmem_to_hbm [thread:$0]  %s488, 1024, %s490, %s474, 128, 128, 8
        $region44: #{tpu_custom_call.1} parent=31 // pred_fallthru
          _
      $region32: #{tpu_custom_call.1} parent=5 // pred_fallthru
        _
      %p496 = scmp.le.s32.totalorder 2, %s19
      // Predicated region
      $region45: #{tpu_custom_call.1} parent=5 // pred_check
        %p497 = pneg %p496
      $region46: #{tpu_custom_call.1} parent=5 // pred_check_branch
        %499 = sbr.rel (%p497) target = $region48
      $region47: #{tpu_custom_call.1} parent=5 // pred_region
        %s500 = ssub.s32 %s19, 2
        // Predicated region
        $region49: #{tpu_custom_call.1} parent=47 // pred_check
          %p501 = pneg %p139
        $region50: #{tpu_custom_call.1} parent=47 // pred_check_branch
          %503 = sbr.rel (%p501) target = $region52
        $region51: #{tpu_custom_call.1} parent=47 // pred_region
          %s504 = sand.u32 %s124, 1
          %s505 = scalar_lea.sflag [#allocation5], %s504
          %s506 = sand.u32 %s124, 1
          %s507 = smul.addr %s506, 64
          %s508 = scalar_lea.vmem [#allocation8], %s507
          %510 = dma.done %s505, 1024
        $region52: #{tpu_custom_call.1} parent=47 // pred_fallthru
          _
      $region48: #{tpu_custom_call.1} parent=5 // pred_fallthru
        _
    $region6: #{tpu_custom_call.1} parent=1 // loop_footer
      %s23 = sadd.s32 1, %s19
    $region7: #{tpu_custom_call.1} parent=1 // loop_footer_branch
      %18 = sbr.rel target = $region3
    $region8: #{tpu_custom_call.1} parent=1 // loop_exit
      _
    %511 = vsyncpa [#allocation4], 1
    %s512 = scalar_lea.sflag [#allocation4], 1
    %513 = vsyncpa %s512, 1
    %514 = vsyncpa [#allocation7], 1
    %s515 = scalar_lea.sflag [#allocation7], 1
    %516 = vsyncpa %s515, 1
    %517 = vsyncpa [#allocation5], 1
    %s518 = scalar_lea.sflag [#allocation5], 1
    %519 = vsyncpa %s518, 1

</llo_original>
